<compile_context>
chip_gen: v5e
topology: v5e:2x2
jax: 0.10.0
libtpu: 0.0.40
codegen_flags: <defaults>
</compile_context>

<pallas_src>
import functools

import jax
import jax.numpy as jnp
from jax import lax
from jax.experimental import pallas as pl
from jax.experimental.pallas import tpu as pltpu

LANE = 128        # feature (N/K) dims of hidden layers padded to the 128-lane width
ROW_ALIGN = 16    # batch-row alignment (bf16 sublane packing of in-kernel casts)
CHUNK_ROWS = 512  # rows of the batch tile processed per inner sub-chunk


def _round_up(n, m):
    return ((n + m - 1) // m) * m


def mlp5_kernel(x_ref,
                w1_ref, b1_ref, w2_ref, b2_ref, w3_ref, b3_ref,
                w4_ref, b4_ref, w5_ref, b5_ref,
                o_ref, *, chunk_rows):
    """Fused forward for one batch tile: 4x (Linear + ReLU) + Linear.

    bf16 operands on the MXU with f32 accumulation; bias add / ReLU in f32 on the
    VPU. Large batch tiles are processed in row sub-chunks to bound vreg live
    ranges and let chunk i+1's matmuls overlap chunk i's epilogue.
    """
    def layer(h_bf16, w_ref, b_ref, relu):
        acc = jnp.dot(h_bf16, w_ref[...], preferred_element_type=jnp.float32)
        acc = acc + b_ref[...]
        if relu:
            acc = jnp.maximum(acc, 0.0)
        return acc

    def chain(h0_bf16):
        h = layer(h0_bf16, w1_ref, b1_ref, True).astype(jnp.bfloat16)
        h = layer(h, w2_ref, b2_ref, True).astype(jnp.bfloat16)
        h = layer(h, w3_ref, b3_ref, True).astype(jnp.bfloat16)
        h = layer(h, w4_ref, b4_ref, True).astype(jnp.bfloat16)
        return layer(h, w5_ref, b5_ref, False)

    bt = x_ref.shape[0]
    n_chunks = bt // chunk_rows
    if n_chunks <= 1:
        # Small tile: single straight-line chain.
        o_ref[...] = chain(x_ref[...].astype(jnp.bfloat16)).astype(o_ref.dtype)
    else:
        # Large tile: unrolled sub-chunk loop over aligned row slices.
        def body(c, carry):
            r = pl.multiple_of(c * chunk_rows, chunk_rows)
            h0 = x_ref[pl.ds(r, chunk_rows), :].astype(jnp.bfloat16)
            o_ref[pl.ds(r, chunk_rows), :] = chain(h0).astype(o_ref.dtype)
            return carry
        lax.fori_loop(0, n_chunks, body, 0, unroll=True)


def _prepare_params(params):
    """One-time weight prep (hoisted out of the forward path).

    params: list of 5 (W, b) with W (in, out) (i.e. PyTorch Linear weight
    transposed) and b (1, out). Hidden/output feature dims are zero-padded to
    multiples of 128 (lane-dense, full MXU columns); W1's K rows stay unpadded.
    Weights cast to bf16 (halved HBM/VMEM), biases stay f32.
    """
    dims = [params[0][0].shape[0]] + [w.shape[1] for (w, _) in params]
    dims_p = [dims[0]] + [_round_up(d, LANE) for d in dims[1:]]
    flat = []
    for li, (w, b) in enumerate(params):
        kp, np_ = dims_p[li], dims_p[li + 1]
        w_p = jnp.zeros((kp, np_), jnp.bfloat16).at[:w.shape[0], :w.shape[1]].set(
            w.astype(jnp.bfloat16))
        b_p = jnp.zeros((1, np_), jnp.float32).at[:, :b.shape[1]].set(
            b.astype(jnp.float32))
        flat.extend([w_p, b_p])
    return tuple(flat), dims, dims_p


def make_mlp5_forward(params, *, batch_tile=2048):
    """Build a jitted forward: x (B, input_dim) f32 -> (B, output_dim) f32."""
    flat, dims, dims_p = _prepare_params(params)
    d_in, d_out = dims[0], dims[-1]
    n_out_p = dims_p[-1]
    w_bytes = sum(int(a.size) * a.dtype.itemsize for a in flat)

    def fwd(x):
        B = x.shape[0]
        row_align = ROW_ALIGN if B >= ROW_ALIGN else 8

        # Batch tile: as large as useful, but keep >= 2 grid steps when the batch
        # can be split so v7x's two TensorCores both get work ("parallel" axis).
        bt = min(batch_tile, _round_up(B, row_align))
        half = _round_up(pl.cdiv(B, 2), row_align)
        if row_align <= half < bt:
            bt = half
        bt = max(bt, row_align)
        grid = (pl.cdiv(B, bt),)

        chunk_rows = CHUNK_ROWS if (bt > CHUNK_ROWS and bt % CHUNK_ROWS == 0) else bt

        # x is read directly (no host pad/cast): full feature dim block is legal.
        in_specs = [pl.BlockSpec((bt, d_in), lambda i: (i, 0))]
        for a in flat:
            # Constant index map: weights/biases resident in VMEM across all steps.
            # TODO(synk): for large hidden_dim on v7x (64 MiB VMEM), single-buffer
            # these via pipeline_mode=pl.Buffered(1) or switch to a K/N-tiled
            # variant with a reduction grid axis.
            in_specs.append(pl.BlockSpec(a.shape, lambda i: (0, 0)))
        out_specs = pl.BlockSpec((bt, n_out_p), lambda i: (i, 0))

        flops = 2 * B * sum(dims_p[i] * dims_p[i + 1] for i in range(5))
        bytes_accessed = (int(x.size) * x.dtype.itemsize + w_bytes + B * n_out_p * 4)
        cost = pl.CostEstimate(flops=int(flops), transcendentals=0,
                               bytes_accessed=int(bytes_accessed))

        # Explicit VMEM budget: double-buffered x/out blocks + (double-buffered)
        # weights + per-chunk f32 intermediates + headroom; clamped to a value
        # that is safe on every generation (v5e/v6e/v7x).
        x_blk = bt * d_in * 4
        o_blk = bt * n_out_p * 4
        interm = chunk_rows * max(dims_p) * 4 * 6
        needed = 2 * (x_blk + o_blk) + 2 * w_bytes + interm
        vmem_limit = int(min(max(needed + (4 << 20), 16 << 20), 48 << 20))

        out_p = pl.pallas_call(
            functools.partial(mlp5_kernel, chunk_rows=chunk_rows),
            out_shape=jax.ShapeDtypeStruct((B, n_out_p), jnp.float32),
            grid_spec=pltpu.PrefetchScalarGridSpec(
                num_scalar_prefetch=0,
                grid=grid,
                in_specs=in_specs,
                out_specs=out_specs,
            ),
            compiler_params=pltpu.CompilerParams(
                dimension_semantics=("parallel",),
                vmem_limit_bytes=vmem_limit,
            ),
            cost_estimate=cost,
        )(x, *flat)
        # Lane-dense (padded-to-128) kernel output; drop the padded columns here.
        return out_p[:, :d_out]

    return jax.jit(fwd)


def init_mlp5_params(key, input_dim, output_dim, hidden_dim=64):
    """PyTorch nn.Linear default init (U[-1/sqrt(fan_in), 1/sqrt(fan_in)]).

    Returns list of (W_transposed, bias): W (in, out), bias (1, out)."""
    dims = [input_dim] + [hidden_dim] * 4 + [output_dim]
    params = []
    for li in range(5):
        fan_in, fan_out = dims[li], dims[li + 1]
        key, kw, kb = jax.random.split(key, 3)
        bound = 1.0 / (fan_in ** 0.5)
        w_t = jax.random.uniform(kw, (fan_in, fan_out), jnp.float32, -bound, bound)
        b = jax.random.uniform(kb, (1, fan_out), jnp.float32, -bound, bound)
        params.append((w_t, b))
    return params


def mlp5_reference(x, params):
    """Pure-JAX reference with the same numerics as the kernel
    (bf16 matmul operands, f32 accumulation / bias / ReLU)."""
    h = x.astype(jnp.bfloat16)
    for i, (w, b) in enumerate(params):
        acc = jnp.dot(h, w.astype(jnp.bfloat16),
                      preferred_element_type=jnp.float32) + b
        if i < len(params) - 1:
            h = jnp.maximum(acc, 0.0).astype(jnp.bfloat16)
        else:
            h = acc
    return h


if __name__ == "__main__":
    key = jax.random.PRNGKey(0)
    k_x, k_p = jax.random.split(key)

    batch, input_dim, hidden_dim, output_dim = 8, 32, 64, 16
    x = jax.random.normal(k_x, (batch, input_dim), jnp.float32)
    params = init_mlp5_params(k_p, input_dim, output_dim, hidden_dim)

    mlp5 = make_mlp5_forward(params)
    out = jax.block_until_ready(mlp5(x))

    ref = mlp5_reference(x, params)
    assert out.shape == (batch, output_dim), out.shape
    assert out.dtype == jnp.float32, out.dtype
    assert jnp.allclose(out, ref, atol=2e-2, rtol=2e-2), "mismatch vs reference"

    print("KERNEL_OK")
</pallas_src>

<mosaic_0001>
module attributes {stable_mosaic.version = 11 : i64} {
  func.func @mlp5_kernel(%arg0: i32, %arg1: memref<8x32xf32, #tpu.memory_space<vmem>>, %arg2: memref<32x128xbf16, #tpu.memory_space<vmem>>, %arg3: memref<1x128xf32, #tpu.memory_space<vmem>>, %arg4: memref<128x128xbf16, #tpu.memory_space<vmem>>, %arg5: memref<1x128xf32, #tpu.memory_space<vmem>>, %arg6: memref<128x128xbf16, #tpu.memory_space<vmem>>, %arg7: memref<1x128xf32, #tpu.memory_space<vmem>>, %arg8: memref<128x128xbf16, #tpu.memory_space<vmem>>, %arg9: memref<1x128xf32, #tpu.memory_space<vmem>>, %arg10: memref<128x128xbf16, #tpu.memory_space<vmem>>, %arg11: memref<1x128xf32, #tpu.memory_space<vmem>>, %arg12: memref<8x128xf32, #tpu.memory_space<vmem>>) attributes {dimension_semantics = [#tpu.dimension_semantics<parallel>], iteration_bounds = array<i64: 1>, scalar_prefetch = 0 : i64, scratch_operands = 0 : i64, tpu.core_type = #tpu.core_type<tc>, window_params = [{transform_indices = @transform_0, window_bounds = array<i64: 8, 32>}, {pipeline_mode = #tpu.pipeline_mode<synchronous>, transform_indices = @transform_1, window_bounds = array<i64: 32, 128>}, {pipeline_mode = #tpu.pipeline_mode<synchronous>, transform_indices = @transform_2, window_bounds = array<i64: 1, 128>}, {pipeline_mode = #tpu.pipeline_mode<synchronous>, transform_indices = @transform_3, window_bounds = array<i64: 128, 128>}, {pipeline_mode = #tpu.pipeline_mode<synchronous>, transform_indices = @transform_4, window_bounds = array<i64: 1, 128>}, {pipeline_mode = #tpu.pipeline_mode<synchronous>, transform_indices = @transform_5, window_bounds = array<i64: 128, 128>}, {pipeline_mode = #tpu.pipeline_mode<synchronous>, transform_indices = @transform_6, window_bounds = array<i64: 1, 128>}, {pipeline_mode = #tpu.pipeline_mode<synchronous>, transform_indices = @transform_7, window_bounds = array<i64: 128, 128>}, {pipeline_mode = #tpu.pipeline_mode<synchronous>, transform_indices = @transform_8, window_bounds = array<i64: 1, 128>}, {pipeline_mode = #tpu.pipeline_mode<synchronous>, transform_indices = @transform_9, window_bounds = array<i64: 128, 128>}, {pipeline_mode = #tpu.pipeline_mode<synchronous>, transform_indices = @transform_10, window_bounds = array<i64: 1, 128>}, {transform_indices = @transform_11, window_bounds = array<i64: 8, 128>}]} {
    %c0 = arith.constant 0 : index
    %c0_0 = arith.constant 0 : index
    %0 = vector.load %arg1[%c0, %c0_0] : memref<8x32xf32, #tpu.memory_space<vmem>>, vector<8x32xf32>
    %1 = arith.truncf %0 : vector<8x32xf32> to vector<8x32xbf16>
    %c0_1 = arith.constant 0 : index
    %c0_2 = arith.constant 0 : index
    %2 = vector.load %arg2[%c0_1, %c0_2] : memref<32x128xbf16, #tpu.memory_space<vmem>>, vector<32x128xbf16>
    %cst = arith.constant dense<0.000000e+00> : vector<8x128xf32>
    %3 = tpu.matmul %1, %2, %cst {dimension_numbers = #tpu.dot_dimension_numbers<[1], [0], [0], [1], [0, 0, 1, 1], [], []>} : vector<8x32xbf16>, vector<32x128xbf16>, vector<8x128xf32> -> vector<8x128xf32>
    %c0_3 = arith.constant 0 : index
    %c0_4 = arith.constant 0 : index
    %4 = vector.load %arg3[%c0_3, %c0_4] : memref<1x128xf32, #tpu.memory_space<vmem>>, vector<1x128xf32>
    %5 = vector.broadcast %4 : vector<1x128xf32> to vector<8x128xf32>
    %6 = arith.addf %3, %5 : vector<8x128xf32>
    %cst_5 = arith.constant 0.000000e+00 : f32
    %7 = vector.broadcast %cst_5 : f32 to vector<8x128xf32>
    %8 = arith.maximumf %6, %7 : vector<8x128xf32>
    %9 = arith.truncf %8 : vector<8x128xf32> to vector<8x128xbf16>
    %c0_6 = arith.constant 0 : index
    %c0_7 = arith.constant 0 : index
    %10 = vector.load %arg4[%c0_6, %c0_7] : memref<128x128xbf16, #tpu.memory_space<vmem>>, vector<128x128xbf16>
    %cst_8 = arith.constant dense<0.000000e+00> : vector<8x128xf32>
    %11 = tpu.matmul %9, %10, %cst_8 {dimension_numbers = #tpu.dot_dimension_numbers<[1], [0], [0], [1], [0, 0, 1, 1], [], []>} : vector<8x128xbf16>, vector<128x128xbf16>, vector<8x128xf32> -> vector<8x128xf32>
    %c0_9 = arith.constant 0 : index
    %c0_10 = arith.constant 0 : index
    %12 = vector.load %arg5[%c0_9, %c0_10] : memref<1x128xf32, #tpu.memory_space<vmem>>, vector<1x128xf32>
    %13 = vector.broadcast %12 : vector<1x128xf32> to vector<8x128xf32>
    %14 = arith.addf %11, %13 : vector<8x128xf32>
    %cst_11 = arith.constant 0.000000e+00 : f32
    %15 = vector.broadcast %cst_11 : f32 to vector<8x128xf32>
    %16 = arith.maximumf %14, %15 : vector<8x128xf32>
    %17 = arith.truncf %16 : vector<8x128xf32> to vector<8x128xbf16>
    %c0_12 = arith.constant 0 : index
    %c0_13 = arith.constant 0 : index
    %18 = vector.load %arg6[%c0_12, %c0_13] : memref<128x128xbf16, #tpu.memory_space<vmem>>, vector<128x128xbf16>
    %cst_14 = arith.constant dense<0.000000e+00> : vector<8x128xf32>
    %19 = tpu.matmul %17, %18, %cst_14 {dimension_numbers = #tpu.dot_dimension_numbers<[1], [0], [0], [1], [0, 0, 1, 1], [], []>} : vector<8x128xbf16>, vector<128x128xbf16>, vector<8x128xf32> -> vector<8x128xf32>
    %c0_15 = arith.constant 0 : index
    %c0_16 = arith.constant 0 : index
    %20 = vector.load %arg7[%c0_15, %c0_16] : memref<1x128xf32, #tpu.memory_space<vmem>>, vector<1x128xf32>
    %21 = vector.broadcast %20 : vector<1x128xf32> to vector<8x128xf32>
    %22 = arith.addf %19, %21 : vector<8x128xf32>
    %cst_17 = arith.constant 0.000000e+00 : f32
    %23 = vector.broadcast %cst_17 : f32 to vector<8x128xf32>
    %24 = arith.maximumf %22, %23 : vector<8x128xf32>
    %25 = arith.truncf %24 : vector<8x128xf32> to vector<8x128xbf16>
    %c0_18 = arith.constant 0 : index
    %c0_19 = arith.constant 0 : index
    %26 = vector.load %arg8[%c0_18, %c0_19] : memref<128x128xbf16, #tpu.memory_space<vmem>>, vector<128x128xbf16>
    %cst_20 = arith.constant dense<0.000000e+00> : vector<8x128xf32>
    %27 = tpu.matmul %25, %26, %cst_20 {dimension_numbers = #tpu.dot_dimension_numbers<[1], [0], [0], [1], [0, 0, 1, 1], [], []>} : vector<8x128xbf16>, vector<128x128xbf16>, vector<8x128xf32> -> vector<8x128xf32>
    %c0_21 = arith.constant 0 : index
    %c0_22 = arith.constant 0 : index
    %28 = vector.load %arg9[%c0_21, %c0_22] : memref<1x128xf32, #tpu.memory_space<vmem>>, vector<1x128xf32>
    %29 = vector.broadcast %28 : vector<1x128xf32> to vector<8x128xf32>
    %30 = arith.addf %27, %29 : vector<8x128xf32>
    %cst_23 = arith.constant 0.000000e+00 : f32
    %31 = vector.broadcast %cst_23 : f32 to vector<8x128xf32>
    %32 = arith.maximumf %30, %31 : vector<8x128xf32>
    %33 = arith.truncf %32 : vector<8x128xf32> to vector<8x128xbf16>
    %c0_24 = arith.constant 0 : index
    %c0_25 = arith.constant 0 : index
    %34 = vector.load %arg10[%c0_24, %c0_25] : memref<128x128xbf16, #tpu.memory_space<vmem>>, vector<128x128xbf16>
    %cst_26 = arith.constant dense<0.000000e+00> : vector<8x128xf32>
    %35 = tpu.matmul %33, %34, %cst_26 {dimension_numbers = #tpu.dot_dimension_numbers<[1], [0], [0], [1], [0, 0, 1, 1], [], []>} : vector<8x128xbf16>, vector<128x128xbf16>, vector<8x128xf32> -> vector<8x128xf32>
    %c0_27 = arith.constant 0 : index
    %c0_28 = arith.constant 0 : index
    %36 = vector.load %arg11[%c0_27, %c0_28] : memref<1x128xf32, #tpu.memory_space<vmem>>, vector<1x128xf32>
    %37 = vector.broadcast %36 : vector<1x128xf32> to vector<8x128xf32>
    %38 = arith.addf %35, %37 : vector<8x128xf32>
    %c0_29 = arith.constant 0 : index
    %c0_30 = arith.constant 0 : index
    %39 = vector.load %arg12[%c0_29, %c0_30] : memref<8x128xf32, #tpu.memory_space<vmem>>, vector<8x128xf32>
    tpu.vector_store %arg12[%c0_29, %c0_30], %38 {strides = array<i32>} : memref<8x128xf32, #tpu.memory_space<vmem>>, vector<8x128xf32>,
    return
  }
  func.func @transform_0(%arg0: i32) -> (i32, i32) {
    %c0_i32 = arith.constant 0 : i32
    %c0_i32_0 = arith.constant 0 : i32
    return %arg0, %c0_i32 : i32, i32
  }
  func.func @transform_1(%arg0: i32) -> (i32, i32) {
    %c0_i32 = arith.constant 0 : i32
    %c0_i32_0 = arith.constant 0 : i32
    %c0_i32_1 = arith.constant 0 : i32
    return %c0_i32, %c0_i32_0 : i32, i32
  }
  func.func @transform_2(%arg0: i32) -> (i32, i32) {
    %c0_i32 = arith.constant 0 : i32
    %c0_i32_0 = arith.constant 0 : i32
    %c0_i32_1 = arith.constant 0 : i32
    return %c0_i32, %c0_i32_0 : i32, i32
  }
  func.func @transform_3(%arg0: i32) -> (i32, i32) {
    %c0_i32 = arith.constant 0 : i32
    %c0_i32_0 = arith.constant 0 : i32
    %c0_i32_1 = arith.constant 0 : i32
    return %c0_i32, %c0_i32_0 : i32, i32
  }
  func.func @transform_4(%arg0: i32) -> (i32, i32) {
    %c0_i32 = arith.constant 0 : i32
    %c0_i32_0 = arith.constant 0 : i32
    %c0_i32_1 = arith.constant 0 : i32
    return %c0_i32, %c0_i32_0 : i32, i32
  }
  func.func @transform_5(%arg0: i32) -> (i32, i32) {
    %c0_i32 = arith.constant 0 : i32
    %c0_i32_0 = arith.constant 0 : i32
    %c0_i32_1 = arith.constant 0 : i32
    return %c0_i32, %c0_i32_0 : i32, i32
  }
  func.func @transform_6(%arg0: i32) -> (i32, i32) {
    %c0_i32 = arith.constant 0 : i32
    %c0_i32_0 = arith.constant 0 : i32
    %c0_i32_1 = arith.constant 0 : i32
    return %c0_i32, %c0_i32_0 : i32, i32
  }
  func.func @transform_7(%arg0: i32) -> (i32, i32) {
    %c0_i32 = arith.constant 0 : i32
    %c0_i32_0 = arith.constant 0 : i32
    %c0_i32_1 = arith.constant 0 : i32
    return %c0_i32, %c0_i32_0 : i32, i32
  }
  func.func @transform_8(%arg0: i32) -> (i32, i32) {
    %c0_i32 = arith.constant 0 : i32
    %c0_i32_0 = arith.constant 0 : i32
    %c0_i32_1 = arith.constant 0 : i32
    return %c0_i32, %c0_i32_0 : i32, i32
  }
  func.func @transform_9(%arg0: i32) -> (i32, i32) {
    %c0_i32 = arith.constant 0 : i32
    %c0_i32_0 = arith.constant 0 : i32
    %c0_i32_1 = arith.constant 0 : i32
    return %c0_i32, %c0_i32_0 : i32, i32
  }
  func.func @transform_10(%arg0: i32) -> (i32, i32) {
    %c0_i32 = arith.constant 0 : i32
    %c0_i32_0 = arith.constant 0 : i32
    %c0_i32_1 = arith.constant 0 : i32
    return %c0_i32, %c0_i32_0 : i32, i32
  }
  func.func @transform_11(%arg0: i32) -> (i32, i32) {
    %c0_i32 = arith.constant 0 : i32
    %c0_i32_0 = arith.constant 0 : i32
    return %arg0, %c0_i32 : i32, i32
  }
}

</mosaic_0001>

<llo_original>
// kernel: fwd.1
$region0: #{fwd.1}
  #allocation0 [shape = 'u32[]', space=smem, size = 0x4, offset = 0x4, fixed_abs, tag = 'smem constant byte address 0x4 - core index']
  #allocation1 [shape = 'u32[72,128]{1,0:T(1,128)}', space=vmem, size = 0x9000, scoped, tag = 'internal scratch']
  %s0 = inlined_call_operand.hbm [shape: f32[8,32], index: 0, kind: input, shape index: {}]
  %s1 = inlined_call_operand.hbm [shape: bf16[32,128], index: 1, kind: input, shape index: {}]
  %s2 = inlined_call_operand.hbm [shape: f32[1,128], index: 2, kind: input, shape index: {}]
  %s3 = inlined_call_operand.hbm [shape: bf16[128,128], index: 3, kind: input, shape index: {}]
  %s4 = inlined_call_operand.hbm [shape: f32[1,128], index: 4, kind: input, shape index: {}]
  %s5 = inlined_call_operand.hbm [shape: bf16[128,128], index: 5, kind: input, shape index: {}]
  %s6 = inlined_call_operand.vmem [shape: f32[1,128], index: 6, kind: input, shape index: {}]
  %s7 = inlined_call_operand.hbm [shape: bf16[128,128], index: 7, kind: input, shape index: {}]
  %s8 = inlined_call_operand.vmem [shape: f32[1,128], index: 8, kind: input, shape index: {}]
  %s9 = inlined_call_operand.hbm [shape: bf16[128,128], index: 9, kind: input, shape index: {}]
  %s10 = inlined_call_operand.vmem [shape: f32[1,128], index: 10, kind: input, shape index: {}]
  %s11 = inlined_call_operand.hbm [shape: f32[8,128], index: 11, kind: output, shape index: {}]
  %s12 = sld [smem:[#allocation0]]
  $region86: #{fwd.1} parent=0
    _
  %s14 = ssub.s32 1, %s12
  %s15 = scalar_select 0, %s14, %s12
  $region1: #{fwd.1} parent=0
    #allocation2 [shape = 'u8[4096]{0}', space=vmem, size = 0x1000, scoped, tag = 'input window, operand 0, single buffered']
    #allocation3 [shape = 's32[1]{0}', space=sflag, size = 0x4, scoped, tag = 'scoped memory for fwd.1']
    #allocation4 [shape = 's32[1]{0}', space=sflag, size = 0x4, scoped, tag = 'scoped memory for fwd.1']
    #allocation5 [shape = 'u8[8192]{0}', space=vmem, size = 0x2000, scoped, tag = 'input window, operand 1, single buffered']
    #allocation6 [shape = 's32[1]{0}', space=sflag, size = 0x4, scoped, tag = 'scoped memory for fwd.1']
    #allocation7 [shape = 'u8[512]{0}', space=vmem, size = 0x400, scoped, tag = 'input window, operand 2, single buffered']
    #allocation8 [shape = 'u8[32768]{0}', space=vmem, size = 0x8000, scoped, tag = 'input window, operand 3, single buffered']
    #allocation9 [shape = 's32[1]{0}', space=sflag, size = 0x4, scoped, tag = 'scoped memory for fwd.1']
    #allocation10 [shape = 'u8[512]{0}', space=vmem, size = 0x400, scoped, tag = 'input window, operand 4, single buffered']
    #allocation11 [shape = 'u8[32768]{0}', space=vmem, size = 0x8000, scoped, tag = 'input window, operand 5, single buffered']
    #allocation12 [shape = 's32[1]{0}', space=sflag, size = 0x4, scoped, tag = 'scoped memory for fwd.1']
    #allocation13 [shape = 'u8[32768]{0}', space=vmem, size = 0x8000, scoped, tag = 'input window, operand 7, single buffered']
    #allocation14 [shape = 'u8[32768]{0}', space=vmem, size = 0x8000, scoped, tag = 'input window, operand 9, single buffered']
    #allocation15 [shape = 's32[1]{0}', space=sflag, size = 0x4, scoped, tag = 'scoped memory for fwd.1']
    #allocation16 [shape = 'u8[4096]{0}', space=vmem, size = 0x1000, scoped, tag = 'output window, operand 0, single buffered']
    %16 = vsyncpa [#allocation3], 0
    %17 = vsyncpa [#allocation6], 0
    %18 = vsyncpa [#allocation9], 0
    %19 = vsyncpa [#allocation12], 0
    %20 = vsyncpa [#allocation15], 0
    %21 = vsyncpa [#allocation4], 0
    // Predicated region
    $region2: #{fwd.1} parent=1 // pred_check
      _
    $region3: #{fwd.1} parent=1 // pred_check_branch
      %23 = sbr.rel (0) target = $region5
    $region4: #{fwd.1} parent=1 // pred_region
      %25 = vsyncadd [#allocation3], 0
      %s27 = sshll.u32 %s0, 4
      %s28 = int_to_ptr.hbm [resolvable:$true] %s27
      %s29 = sshll.u32 [#allocation2], 4
      %s30 = int_to_ptr.vmem [resolvable:$true] %s29
      %32 = dma.hbm_to_vmem [thread:$0]  %s28, 128, %s30, [#allocation3]
    $region5: #{fwd.1} parent=1 // pred_fallthru
      _
    // Predicated region
    $region6: #{fwd.1} parent=1 // pred_check
      _
    $region7: #{fwd.1} parent=1 // pred_check_branch
      %34 = sbr.rel (0) target = $region9
    $region8: #{fwd.1} parent=1 // pred_region
      %36 = vsyncadd [#allocation6], 0
      %s37 = sshll.u32 %s1, 4
      %s38 = int_to_ptr.hbm [resolvable:$true] %s37
      %s39 = sshll.u32 [#allocation5], 4
      %s40 = int_to_ptr.vmem [resolvable:$true] %s39
      %45 = dma.hbm_to_vmem [thread:$0]  %s38, 256, %s40, [#allocation6], 64, 64, 4
    $region9: #{fwd.1} parent=1 // pred_fallthru
      _
    // Predicated region
    $region10: #{fwd.1} parent=1 // pred_check
      _
    $region11: #{fwd.1} parent=1 // pred_check_branch
      %47 = sbr.rel (0) target = $region13
    $region12: #{fwd.1} parent=1 // pred_region
      %49 = vsyncadd [#allocation6], 0
      %s51 = sshll.u32 %s2, 4
      %s52 = int_to_ptr.hbm [resolvable:$true] %s51
      %s53 = sshll.u32 [#allocation7], 4
      %s54 = int_to_ptr.vmem [resolvable:$true] %s53
      %56 = dma.hbm_to_vmem [thread:$0]  %s52, 16, %s54, [#allocation6]
    $region13: #{fwd.1} parent=1 // pred_fallthru
      _
    // Predicated region
    $region14: #{fwd.1} parent=1 // pred_check
      _
    $region15: #{fwd.1} parent=1 // pred_check_branch
      %58 = sbr.rel (0) target = $region17
    $region16: #{fwd.1} parent=1 // pred_region
      %60 = vsyncadd [#allocation9], 0
      %s61 = sshll.u32 %s3, 4
      %s62 = int_to_ptr.hbm [resolvable:$true] %s61
      %s63 = sshll.u32 [#allocation8], 4
      %s64 = int_to_ptr.vmem [resolvable:$true] %s63
      %69 = dma.hbm_to_vmem [thread:$0]  %s62, 1024, %s64, [#allocation9], 64, 64, 4
    $region17: #{fwd.1} parent=1 // pred_fallthru
      _
    // Predicated region
    $region18: #{fwd.1} parent=1 // pred_check
      _
    $region19: #{fwd.1} parent=1 // pred_check_branch
      %71 = sbr.rel (0) target = $region21
    $region20: #{fwd.1} parent=1 // pred_region
      %73 = vsyncadd [#allocation9], 0
      %s75 = sshll.u32 %s4, 4
      %s76 = int_to_ptr.hbm [resolvable:$true] %s75
      %s77 = sshll.u32 [#allocation10], 4
      %s78 = int_to_ptr.vmem [resolvable:$true] %s77
      %80 = dma.hbm_to_vmem [thread:$0]  %s76, 16, %s78, [#allocation9]
    $region21: #{fwd.1} parent=1 // pred_fallthru
      _
    // Predicated region
    $region22: #{fwd.1} parent=1 // pred_check
      _
    $region23: #{fwd.1} parent=1 // pred_check_branch
      %82 = sbr.rel (0) target = $region25
    $region24: #{fwd.1} parent=1 // pred_region
      %84 = vsyncadd [#allocation12], 0
      %s85 = sshll.u32 %s5, 4
      %s86 = int_to_ptr.hbm [resolvable:$true] %s85
      %s87 = sshll.u32 [#allocation11], 4
      %s88 = int_to_ptr.vmem [resolvable:$true] %s87
      %93 = dma.hbm_to_vmem [thread:$0]  %s86, 1024, %s88, [#allocation12], 64, 64, 4
    $region25: #{fwd.1} parent=1 // pred_fallthru
      _
    // Predicated region
    $region26: #{fwd.1} parent=1 // pred_check
      _
    $region27: #{fwd.1} parent=1 // pred_check_branch
      %95 = sbr.rel (0) target = $region29
    $region28: #{fwd.1} parent=1 // pred_region
      _
    $region29: #{fwd.1} parent=1 // pred_fallthru
      _
    // Predicated region
    $region30: #{fwd.1} parent=1 // pred_check
      _
    $region31: #{fwd.1} parent=1 // pred_check_branch
      %97 = sbr.rel (0) target = $region33
    $region32: #{fwd.1} parent=1 // pred_region
      %99 = vsyncadd [#allocation12], 0
      %s100 = sshll.u32 %s7, 4
      %s101 = int_to_ptr.hbm [resolvable:$true] %s100
      %s102 = sshll.u32 [#allocation13], 4
      %s103 = int_to_ptr.vmem [resolvable:$true] %s102
      %108 = dma.hbm_to_vmem [thread:$0]  %s101, 1024, %s103, [#allocation12], 64, 64, 4
    $region33: #{fwd.1} parent=1 // pred_fallthru
      _
    // Predicated region
    $region34: #{fwd.1} parent=1 // pred_check
      _
    $region35: #{fwd.1} parent=1 // pred_check_branch
      %110 = sbr.rel (0) target = $region37
    $region36: #{fwd.1} parent=1 // pred_region
      _
    $region37: #{fwd.1} parent=1 // pred_fallthru
      _
    // Predicated region
    $region38: #{fwd.1} parent=1 // pred_check
      _
    $region39: #{fwd.1} parent=1 // pred_check_branch
      %112 = sbr.rel (0) target = $region41
    $region40: #{fwd.1} parent=1 // pred_region
      %114 = vsyncadd [#allocation15], 0
      %s115 = sshll.u32 %s9, 4
      %s116 = int_to_ptr.hbm [resolvable:$true] %s115
      %s117 = sshll.u32 [#allocation14], 4
      %s118 = int_to_ptr.vmem [resolvable:$true] %s117
      %123 = dma.hbm_to_vmem [thread:$0]  %s116, 1024, %s118, [#allocation15], 64, 64, 4
    $region41: #{fwd.1} parent=1 // pred_fallthru
      _
    // Predicated region
    $region42: #{fwd.1} parent=1 // pred_check
      _
    $region43: #{fwd.1} parent=1 // pred_check_branch
      %125 = sbr.rel (0) target = $region45
    $region44: #{fwd.1} parent=1 // pred_region
      _
    $region45: #{fwd.1} parent=1 // pred_fallthru
      _
    // Predicated region
    $region46: #{fwd.1} parent=1 // pred_check
      _
    $region47: #{fwd.1} parent=1 // pred_check_branch
      %127 = sbr.rel (0) target = $region49
    $region48: #{fwd.1} parent=1 // pred_region
      %129 = dma.done [#allocation3], 128
    $region49: #{fwd.1} parent=1 // pred_fallthru
      _
    // Predicated region
    $region50: #{fwd.1} parent=1 // pred_check
      _
    $region51: #{fwd.1} parent=1 // pred_check_branch
      %131 = sbr.rel (0) target = $region53
    $region52: #{fwd.1} parent=1 // pred_region
      %133 = dma.done [#allocation6], 256
    $region53: #{fwd.1} parent=1 // pred_fallthru
      _
    // Predicated region
    $region54: #{fwd.1} parent=1 // pred_check
      _
    $region55: #{fwd.1} parent=1 // pred_check_branch
      %135 = sbr.rel (0) target = $region57
    $region56: #{fwd.1} parent=1 // pred_region
      %137 = dma.done [#allocation6], 16
    $region57: #{fwd.1} parent=1 // pred_fallthru
      _
    // Predicated region
    $region58: #{fwd.1} parent=1 // pred_check
      _
    $region59: #{fwd.1} parent=1 // pred_check_branch
      %139 = sbr.rel (0) target = $region61
    $region60: #{fwd.1} parent=1 // pred_region
      %141 = dma.done [#allocation9], 1024
    $region61: #{fwd.1} parent=1 // pred_fallthru
      _
    // Predicated region
    $region62: #{fwd.1} parent=1 // pred_check
      _
    $region63: #{fwd.1} parent=1 // pred_check_branch
      %143 = sbr.rel (0) target = $region65
    $region64: #{fwd.1} parent=1 // pred_region
      %145 = dma.done [#allocation9], 16
    $region65: #{fwd.1} parent=1 // pred_fallthru
      _
    // Predicated region
    $region66: #{fwd.1} parent=1 // pred_check
      _
    $region67: #{fwd.1} parent=1 // pred_check_branch
      %147 = sbr.rel (0) target = $region69
    $region68: #{fwd.1} parent=1 // pred_region
      %149 = dma.done [#allocation12], 1024
    $region69: #{fwd.1} parent=1 // pred_fallthru
      _
    // Predicated region
    $region70: #{fwd.1} parent=1 // pred_check
      _
    $region71: #{fwd.1} parent=1 // pred_check_branch
      %151 = sbr.rel (0) target = $region73
    $region72: #{fwd.1} parent=1 // pred_region
      %153 = dma.done [#allocation12], 1024
    $region73: #{fwd.1} parent=1 // pred_fallthru
      _
    // Predicated region
    $region74: #{fwd.1} parent=1 // pred_check
      _
    $region75: #{fwd.1} parent=1 // pred_check_branch
      %155 = sbr.rel (0) target = $region77
    $region76: #{fwd.1} parent=1 // pred_region
      %157 = dma.done [#allocation15], 1024
    $region77: #{fwd.1} parent=1 // pred_fallthru
      _
    %v159 = vld [vmem:[#allocation2] sm:$0xff]
    %v160 = vpack.c.bf16 %v159, %v159
    %v161 = vld [vmem:[#allocation5] sm:$0xf]
    %v162 = vld [vmem:[#allocation5 + $0x4] sm:$0xf]
    %v163 = vld [vmem:[#allocation5 + $0x8] sm:$0xf]
    %v164 = vld [vmem:[#allocation5 + $0xc] sm:$0xf]
    %v165 = vld [vmem:[#allocation7] sm:$0x1]
    %v167 = vperm.slane %v165, 0
    %v173 = vunpack.c.l.b16 %v161
    %v174 = vunpack.c.l.b16 %v162
    %v175 = vunpack.c.l.b16 %v163
    %v176 = vunpack.c.l.b16 %v164
    %v177 = vpack.c.b16 %v174, %v173
    %v178 = vpack.c.b16 %v176, %v175
    %vm181 = vcmask 261120
    %v183 = vsel %vm181, %v160, 0
    %185 = vmatpush.bf16.msra.mxu0 0
    %186 = vmatpush.bf16.msra.mxu0 0
    %187 = vmatpush.bf16.msra.mxu0 0
    %188 = vmatpush.bf16.msra.mxu0 0
    %189 = vmatpush.bf16.msra.mxu0 0
    %190 = vmatpush.bf16.msra.mxu0 0
    %191 = vmatpush.bf16.msra.mxu0 %v178
    %192 = vmatpush.bf16.msra.mxu0 %v177
    %193 = vmatmul.bf16.gmra.mxu0 %v183
    %v194 = vpop.f32.mrf.mxu0
    %v195 = vadd.f32 %v167, %v194
    %v196 = vpop.f32.mrf.mxu0
    %197 = vdwg.mxu0
    %v198 = vmax.f32 %v195, 0.0
    %v199 = vpack.c.bf16 %v198, %v198
    %v200 = vld [vmem:[#allocation8] sm:$0xf]
    %v201 = vld [vmem:[#allocation8 + $0x4] sm:$0xf]
    %v202 = vld [vmem:[#allocation8 + $0x8] sm:$0xf]
    %v203 = vld [vmem:[#allocation8 + $0xc] sm:$0xf]
    %v204 = vld [vmem:[#allocation8 + $0x10] sm:$0xf]
    %v205 = vld [vmem:[#allocation8 + $0x14] sm:$0xf]
    %v206 = vld [vmem:[#allocation8 + $0x18] sm:$0xf]
    %v207 = vld [vmem:[#allocation8 + $0x1c] sm:$0xf]
    %v208 = vld [vmem:[#allocation8 + $0x20] sm:$0xf]
    %v209 = vld [vmem:[#allocation8 + $0x24] sm:$0xf]
    %v210 = vld [vmem:[#allocation8 + $0x28] sm:$0xf]
    %v211 = vld [vmem:[#allocation8 + $0x2c] sm:$0xf]
    %v212 = vld [vmem:[#allocation8 + $0x30] sm:$0xf]
    %v213 = vld [vmem:[#allocation8 + $0x34] sm:$0xf]
    %v214 = vld [vmem:[#allocation8 + $0x38] sm:$0xf]
    %v215 = vld [vmem:[#allocation8 + $0x3c] sm:$0xf]
    %v216 = vld [vmem:[#allocation10] sm:$0x1]
    %v218 = vperm.slane %v216, 0
    %v236 = vunpack.c.l.b16 %v200
    %v237 = vunpack.c.l.b16 %v201
    %v238 = vunpack.c.l.b16 %v202
    %v239 = vunpack.c.l.b16 %v203
    %v240 = vunpack.c.l.b16 %v204
    %v241 = vunpack.c.l.b16 %v205
    %v242 = vunpack.c.l.b16 %v206
    %v243 = vunpack.c.l.b16 %v207
    %v244 = vunpack.c.l.b16 %v208
    %v245 = vunpack.c.l.b16 %v209
    %v246 = vunpack.c.l.b16 %v210
    %v247 = vunpack.c.l.b16 %v211
    %v248 = vunpack.c.l.b16 %v212
    %v249 = vunpack.c.l.b16 %v213
    %v250 = vunpack.c.l.b16 %v214
    %v251 = vunpack.c.l.b16 %v215
    %v252 = vpack.c.b16 %v237, %v236
    %v253 = vpack.c.b16 %v239, %v238
    %v254 = vpack.c.b16 %v241, %v240
    %v255 = vpack.c.b16 %v243, %v242
    %v256 = vpack.c.b16 %v245, %v244
    %v257 = vpack.c.b16 %v247, %v246
    %v258 = vpack.c.b16 %v249, %v248
    %v259 = vpack.c.b16 %v251, %v250
    %268 = vmatpush.bf16.msra.mxu0 %v259
    %269 = vmatpush.bf16.msra.mxu0 %v258
    %270 = vmatpush.bf16.msra.mxu0 %v257
    %271 = vmatpush.bf16.msra.mxu0 %v256
    %272 = vmatpush.bf16.msra.mxu0 %v255
    %273 = vmatpush.bf16.msra.mxu0 %v254
    %274 = vmatpush.bf16.msra.mxu0 %v253
    %275 = vmatpush.bf16.msra.mxu0 %v252
    %276 = vmatmul.bf16.gmra.mxu0 %v199
    %v277 = vpop.f32.mrf.mxu0
    %v278 = vadd.f32 %v218, %v277
    %v279 = vpop.f32.mrf.mxu0
    %280 = vdwg.mxu0
    %v281 = vmax.f32 %v278, 0.0
    %v282 = vpack.c.bf16 %v281, %v281
    %v283 = vld [vmem:[#allocation11] sm:$0xf]
    %v284 = vld [vmem:[#allocation11 + $0x4] sm:$0xf]
    %v285 = vld [vmem:[#allocation11 + $0x8] sm:$0xf]
    %v286 = vld [vmem:[#allocation11 + $0xc] sm:$0xf]
    %v287 = vld [vmem:[#allocation11 + $0x10] sm:$0xf]
    %v288 = vld [vmem:[#allocation11 + $0x14] sm:$0xf]
    %v289 = vld [vmem:[#allocation11 + $0x18] sm:$0xf]
    %v290 = vld [vmem:[#allocation11 + $0x1c] sm:$0xf]
    %v291 = vld [vmem:[#allocation11 + $0x20] sm:$0xf]
    %v292 = vld [vmem:[#allocation11 + $0x24] sm:$0xf]
    %v293 = vld [vmem:[#allocation11 + $0x28] sm:$0xf]
    %v294 = vld [vmem:[#allocation11 + $0x2c] sm:$0xf]
    %v295 = vld [vmem:[#allocation11 + $0x30] sm:$0xf]
    %v296 = vld [vmem:[#allocation11 + $0x34] sm:$0xf]
    %v297 = vld [vmem:[#allocation11 + $0x38] sm:$0xf]
    %v298 = vld [vmem:[#allocation11 + $0x3c] sm:$0xf]
    %v299 = vld [vmem:[%s6] sm:$0x1]
    %v301 = vperm.slane %v299, 0
    %v319 = vunpack.c.l.b16 %v283
    %v320 = vunpack.c.l.b16 %v284
    %v321 = vunpack.c.l.b16 %v285
    %v322 = vunpack.c.l.b16 %v286
    %v323 = vunpack.c.l.b16 %v287
    %v324 = vunpack.c.l.b16 %v288
    %v325 = vunpack.c.l.b16 %v289
    %v326 = vunpack.c.l.b16 %v290
    %v327 = vunpack.c.l.b16 %v291
    %v328 = vunpack.c.l.b16 %v292
    %v329 = vunpack.c.l.b16 %v293
    %v330 = vunpack.c.l.b16 %v294
    %v331 = vunpack.c.l.b16 %v295
    %v332 = vunpack.c.l.b16 %v296
    %v333 = vunpack.c.l.b16 %v297
    %v334 = vunpack.c.l.b16 %v298
    %v335 = vpack.c.b16 %v320, %v319
    %v336 = vpack.c.b16 %v322, %v321
    %v337 = vpack.c.b16 %v324, %v323
    %v338 = vpack.c.b16 %v326, %v325
    %v339 = vpack.c.b16 %v328, %v327
    %v340 = vpack.c.b16 %v330, %v329
    %v341 = vpack.c.b16 %v332, %v331
    %v342 = vpack.c.b16 %v334, %v333
    %351 = vmatpush.bf16.msra.mxu0 %v342
    %352 = vmatpush.bf16.msra.mxu0 %v341
    %353 = vmatpush.bf16.msra.mxu0 %v340
    %354 = vmatpush.bf16.msra.mxu0 %v339
    %355 = vmatpush.bf16.msra.mxu0 %v338
    %356 = vmatpush.bf16.msra.mxu0 %v337
    %357 = vmatpush.bf16.msra.mxu0 %v336
    %358 = vmatpush.bf16.msra.mxu0 %v335
    %359 = vmatmul.bf16.gmra.mxu0 %v282
    %v360 = vpop.f32.mrf.mxu0
    %v361 = vadd.f32 %v301, %v360
    %v362 = vpop.f32.mrf.mxu0
    %363 = vdwg.mxu0
    %v364 = vmax.f32 %v361, 0.0
    %v365 = vpack.c.bf16 %v364, %v364
    %v366 = vld [vmem:[#allocation13] sm:$0xf]
    %v367 = vld [vmem:[#allocation13 + $0x4] sm:$0xf]
    %v368 = vld [vmem:[#allocation13 + $0x8] sm:$0xf]
    %v369 = vld [vmem:[#allocation13 + $0xc] sm:$0xf]
    %v370 = vld [vmem:[#allocation13 + $0x10] sm:$0xf]
    %v371 = vld [vmem:[#allocation13 + $0x14] sm:$0xf]
    %v372 = vld [vmem:[#allocation13 + $0x18] sm:$0xf]
    %v373 = vld [vmem:[#allocation13 + $0x1c] sm:$0xf]
    %v374 = vld [vmem:[#allocation13 + $0x20] sm:$0xf]
    %v375 = vld [vmem:[#allocation13 + $0x24] sm:$0xf]
    %v376 = vld [vmem:[#allocation13 + $0x28] sm:$0xf]
    %v377 = vld [vmem:[#allocation13 + $0x2c] sm:$0xf]
    %v378 = vld [vmem:[#allocation13 + $0x30] sm:$0xf]
    %v379 = vld [vmem:[#allocation13 + $0x34] sm:$0xf]
    %v380 = vld [vmem:[#allocation13 + $0x38] sm:$0xf]
    %v381 = vld [vmem:[#allocation13 + $0x3c] sm:$0xf]
    %v382 = vld [vmem:[%s8] sm:$0x1]
    %v384 = vperm.slane %v382, 0
    %v402 = vunpack.c.l.b16 %v366
    %v403 = vunpack.c.l.b16 %v367
    %v404 = vunpack.c.l.b16 %v368
    %v405 = vunpack.c.l.b16 %v369
    %v406 = vunpack.c.l.b16 %v370
    %v407 = vunpack.c.l.b16 %v371
    %v408 = vunpack.c.l.b16 %v372
    %v409 = vunpack.c.l.b16 %v373
    %v410 = vunpack.c.l.b16 %v374
    %v411 = vunpack.c.l.b16 %v375
    %v412 = vunpack.c.l.b16 %v376
    %v413 = vunpack.c.l.b16 %v377
    %v414 = vunpack.c.l.b16 %v378
    %v415 = vunpack.c.l.b16 %v379
    %v416 = vunpack.c.l.b16 %v380
    %v417 = vunpack.c.l.b16 %v381
    %v418 = vpack.c.b16 %v403, %v402
    %v419 = vpack.c.b16 %v405, %v404
    %v420 = vpack.c.b16 %v407, %v406
    %v421 = vpack.c.b16 %v409, %v408
    %v422 = vpack.c.b16 %v411, %v410
    %v423 = vpack.c.b16 %v413, %v412
    %v424 = vpack.c.b16 %v415, %v414
    %v425 = vpack.c.b16 %v417, %v416
    %434 = vmatpush.bf16.msra.mxu0 %v425
    %435 = vmatpush.bf16.msra.mxu0 %v424
    %436 = vmatpush.bf16.msra.mxu0 %v423
    %437 = vmatpush.bf16.msra.mxu0 %v422
    %438 = vmatpush.bf16.msra.mxu0 %v421
    %439 = vmatpush.bf16.msra.mxu0 %v420
    %440 = vmatpush.bf16.msra.mxu0 %v419
    %441 = vmatpush.bf16.msra.mxu0 %v418
    %442 = vmatmul.bf16.gmra.mxu0 %v365
    %v443 = vpop.f32.mrf.mxu0
    %v444 = vadd.f32 %v384, %v443
    %v445 = vpop.f32.mrf.mxu0
    %446 = vdwg.mxu0
    %v447 = vmax.f32 %v444, 0.0
    %v448 = vpack.c.bf16 %v447, %v447
    %v449 = vld [vmem:[#allocation14] sm:$0xf]
    %v450 = vld [vmem:[#allocation14 + $0x4] sm:$0xf]
    %v451 = vld [vmem:[#allocation14 + $0x8] sm:$0xf]
    %v452 = vld [vmem:[#allocation14 + $0xc] sm:$0xf]
    %v453 = vld [vmem:[#allocation14 + $0x10] sm:$0xf]
    %v454 = vld [vmem:[#allocation14 + $0x14] sm:$0xf]
    %v455 = vld [vmem:[#allocation14 + $0x18] sm:$0xf]
    %v456 = vld [vmem:[#allocation14 + $0x1c] sm:$0xf]
    %v457 = vld [vmem:[#allocation14 + $0x20] sm:$0xf]
    %v458 = vld [vmem:[#allocation14 + $0x24] sm:$0xf]
    %v459 = vld [vmem:[#allocation14 + $0x28] sm:$0xf]
    %v460 = vld [vmem:[#allocation14 + $0x2c] sm:$0xf]
    %v461 = vld [vmem:[#allocation14 + $0x30] sm:$0xf]
    %v462 = vld [vmem:[#allocation14 + $0x34] sm:$0xf]
    %v463 = vld [vmem:[#allocation14 + $0x38] sm:$0xf]
    %v464 = vld [vmem:[#allocation14 + $0x3c] sm:$0xf]
    %v465 = vld [vmem:[%s10] sm:$0x1]
    %v467 = vperm.slane %v465, 0
    %v485 = vunpack.c.l.b16 %v449
    %v486 = vunpack.c.l.b16 %v450
    %v487 = vunpack.c.l.b16 %v451
    %v488 = vunpack.c.l.b16 %v452
    %v489 = vunpack.c.l.b16 %v453
    %v490 = vunpack.c.l.b16 %v454
    %v491 = vunpack.c.l.b16 %v455
    %v492 = vunpack.c.l.b16 %v456
    %v493 = vunpack.c.l.b16 %v457
    %v494 = vunpack.c.l.b16 %v458
    %v495 = vunpack.c.l.b16 %v459
    %v496 = vunpack.c.l.b16 %v460
    %v497 = vunpack.c.l.b16 %v461
    %v498 = vunpack.c.l.b16 %v462
    %v499 = vunpack.c.l.b16 %v463
    %v500 = vunpack.c.l.b16 %v464
    %v501 = vpack.c.b16 %v486, %v485
    %v502 = vpack.c.b16 %v488, %v487
    %v503 = vpack.c.b16 %v490, %v489
    %v504 = vpack.c.b16 %v492, %v491
    %v505 = vpack.c.b16 %v494, %v493
    %v506 = vpack.c.b16 %v496, %v495
    %v507 = vpack.c.b16 %v498, %v497
    %v508 = vpack.c.b16 %v500, %v499
    %517 = vmatpush.bf16.msra.mxu0 %v508
    %518 = vmatpush.bf16.msra.mxu0 %v507
    %519 = vmatpush.bf16.msra.mxu0 %v506
    %520 = vmatpush.bf16.msra.mxu0 %v505
    %521 = vmatpush.bf16.msra.mxu0 %v504
    %522 = vmatpush.bf16.msra.mxu0 %v503
    %523 = vmatpush.bf16.msra.mxu0 %v502
    %524 = vmatpush.bf16.msra.mxu0 %v501
    %525 = vmatmul.bf16.gmra.mxu0 %v448
    %v526 = vpop.f32.mrf.mxu0
    %v527 = vadd.f32 %v467, %v526
    %v528 = vpop.f32.mrf.mxu0
    %529 = vdwg.mxu0
    %530 = vst [vmem:[#allocation16] sm:$0xff] %v527
    // Predicated region
    $region78: #{fwd.1} parent=1 // pred_check
      _
    $region79: #{fwd.1} parent=1 // pred_check_branch
      %532 = sbr.rel (0) target = $region81
    $region80: #{fwd.1} parent=1 // pred_region
      %534 = vsyncadd [#allocation4], 0
      %s536 = sshll.u32 [#allocation16], 4
      %s537 = int_to_ptr.vmem [resolvable:$true] %s536
      %s538 = sshll.u32 %s11, 4
      %s539 = int_to_ptr.hbm [resolvable:$true] %s538
      %541 = dma.vmem_to_hbm [thread:$0]  %s537, 128, %s539, [#allocation4]
    $region81: #{fwd.1} parent=1 // pred_fallthru
      _
    // Predicated region
    $region82: #{fwd.1} parent=1 // pred_check
      _
    $region83: #{fwd.1} parent=1 // pred_check_branch
      %543 = sbr.rel (0) target = $region85
    $region84: #{fwd.1} parent=1 // pred_region
      %545 = dma.done [#allocation4], 128
    $region85: #{fwd.1} parent=1 // pred_fallthru
      _
    %546 = vsyncpa [#allocation3], 1
    %547 = vsyncpa [#allocation6], 1
    %548 = vsyncpa [#allocation9], 1
    %549 = vsyncpa [#allocation12], 1
    %550 = vsyncpa [#allocation15], 1
    %551 = vsyncpa [#allocation4], 1

</llo_original>
